<compile_context>
chip_gen: v7x
topology: tpu7x:2x2x1
jax: 0.10.0
libtpu: 0.0.40
codegen_flags: <defaults>
</compile_context>

<pallas_src>
import jax
import jax.numpy as jnp
from jax.experimental import pallas as pl
from jax.experimental.pallas import tpu as pltpu


K_IN = 10          # in_features of SafeModel's nn.Linear
TL_MAX = 32768     # max lanes (batch rows) per grid step
TINY_BATCH = 128   # below this, plain XLA beats a pallas_call boundary


def _linear_kernel(x_ref, w_ref, b_ref, o_ref):
    # x_ref: (K, TL) f32 VMEM  -- batch on lanes, features on sublanes.
    # w_ref: (K, 1)  f32 VMEM  -- grid-invariant weight column.
    # b_ref: (1,)    f32 SMEM  -- scalar bias.
    # o_ref: (1, TL) f32 VMEM  -- lane-dense output slab.
    x = x_ref[...]                                    # (K, TL)
    w = w_ref[...]                                    # (K, 1), lane-broadcast
    acc = jnp.sum(x * w, axis=0, keepdims=True)       # VPU mul + sublane reduce
    o_ref[...] = (acc + b_ref[0]).astype(o_ref.dtype)


def safe_model_forward_kb(x_kb, weight, bias, *, tile_lanes=None):
    """Linear(10, 1) on a batch-on-lanes input.

    x_kb: (K, B) f32; weight: (1, K) f32 (nn.Linear layout); bias: (1,).
    Returns (B, 1) f32.
    """
    K, B = x_kb.shape
    N = weight.shape[0]                   # out_features == 1 for SafeModel
    w_col = weight.reshape(K, N)          # (K, 1): w_col[k, 0] = weight[0, k]
    b_vec = bias.reshape(N)               # (1,) scalar -> SMEM

    if tile_lanes is None:
        # Big lane tiles amortize per-step overhead; shrink for small batches
        # so we don't allocate a (K, 32768) block for a few hundred rows.
        tile_lanes = min(TL_MAX, 128 * pl.cdiv(B, 128))
    tl = tile_lanes
    grid = (pl.cdiv(B, tl),)              # ragged last block handled by Pallas

    out = pl.pallas_call(
        _linear_kernel,
        out_shape=jax.ShapeDtypeStruct((N, B), jnp.float32),
        grid=grid,
        in_specs=[
            pl.BlockSpec((K, tl), lambda i: (0, i)),            # x: stream lanes
            pl.BlockSpec((K, N), lambda i: (0, 0)),             # weight: invariant
            pl.BlockSpec(memory_space=pltpu.MemorySpace.SMEM),  # bias scalar
        ],
        out_specs=pl.BlockSpec((N, tl), lambda i: (0, i)),
        compiler_params=pltpu.CompilerParams(
            dimension_semantics=("parallel",),     # megacore / v7x dual-TC
            vmem_limit_bytes=32 * 1024 * 1024,     # headroom if TL is raised
        ),
        cost_estimate=pl.CostEstimate(
            flops=2 * B * K,
            transcendentals=0,
            bytes_accessed=(B * K + B + K + 1) * 4,
        ),
    )(x_kb, w_col, b_vec)

    # (1, B) -> (B, 1) is a free relayout (identical row-major bytes).
    return out.reshape(B, N)


def safe_model_forward(x, weight, bias, *, tile_lanes=None):
    """x: (B, 10) f32; weight: (1, 10) f32; bias: (1,) f32 -> (B, 1) f32."""
    B, _ = x.shape
    if B < TINY_BATCH:
        # ~2*B*K flops of work: let XLA fuse it instead of paying a
        # custom-call boundary.
        return x @ weight.T + bias
    return safe_model_forward_kb(x.T, weight, bias, tile_lanes=tile_lanes)


if __name__ == "__main__":
    key = jax.random.PRNGKey(0)
    k_x1, k_x2, k_x3, k_w, k_b = jax.random.split(key, 5)

    in_features, out_features = K_IN, 1

    # Deterministic params mimicking PyTorch's default nn.Linear init
    # (uniform in [-1/sqrt(fan_in), 1/sqrt(fan_in)]), kept in nn.Linear layout.
    bound = 1.0 / jnp.sqrt(jnp.float32(in_features))
    weight = jax.random.uniform(
        k_w, (out_features, in_features), jnp.float32, -bound, bound
    )
    bias = jax.random.uniform(k_b, (out_features,), jnp.float32, -bound, bound)

    # 1) Small-but-kernel-sized batch: single grid step through the Pallas path.
    B1 = 512
    x1 = jax.random.normal(k_x1, (B1, in_features), jnp.float32)
    out1 = jax.block_until_ready(safe_model_forward(x1, weight, bias))
    ref1 = x1 @ weight.T + bias
    assert out1.shape == (B1, out_features)
    assert jnp.allclose(out1, ref1, atol=1e-5, rtol=1e-5)

    # 2) Ragged batch with a small tile: exercises the cdiv grid and the
    #    partially out-of-bounds last block (grid = 4 steps).
    B2 = 1000
    x2 = jax.random.normal(k_x2, (B2, in_features), jnp.float32)
    out2 = jax.block_until_ready(
        safe_model_forward(x2, weight, bias, tile_lanes=256)
    )
    ref2 = x2 @ weight.T + bias
    assert out2.shape == (B2, out_features)
    assert jnp.allclose(out2, ref2, atol=1e-5, rtol=1e-5)

    # 3) Tiny batch routes to plain XLA (no pallas_call boundary).
    B3 = 8
    x3 = jax.random.normal(k_x3, (B3, in_features), jnp.float32)
    out3 = jax.block_until_ready(safe_model_forward(x3, weight, bias))
    ref3 = x3 @ weight.T + bias
    assert out3.shape == (B3, out_features)
    assert jnp.allclose(out3, ref3, atol=1e-5, rtol=1e-5)

    print("KERNEL_OK")
</pallas_src>

<mosaic_0001>
module attributes {stable_mosaic.version = 11 : i64} {
  func.func @_linear_kernel(%arg0: i32, %arg1: memref<10x512xf32, #tpu.memory_space<vmem>>, %arg2: memref<10x1xf32, #tpu.memory_space<vmem>>, %arg3: memref<1xf32, #tpu.memory_space<smem>>, %arg4: memref<1x512xf32, #tpu.memory_space<vmem>>) attributes {dimension_semantics = [#tpu.dimension_semantics<parallel>], iteration_bounds = array<i64: 1>, scalar_prefetch = 0 : i64, scratch_operands = 0 : i64, tpu.core_type = #tpu.core_type<tc>, window_params = [{transform_indices = @transform_0, window_bounds = array<i64: 10, 512>}, {pipeline_mode = #tpu.pipeline_mode<synchronous>, transform_indices = @transform_1, window_bounds = array<i64: 10, 1>}, {transform_indices = @transform_2, window_bounds = array<i64: 1>}, {transform_indices = @transform_3, window_bounds = array<i64: 1, 512>}]} {
    %c0 = arith.constant 0 : index
    %c0_0 = arith.constant 0 : index
    %0 = vector.load %arg1[%c0, %c0_0] : memref<10x512xf32, #tpu.memory_space<vmem>>, vector<10x512xf32>
    %c0_1 = arith.constant 0 : index
    %c0_2 = arith.constant 0 : index
    %1 = vector.load %arg2[%c0_1, %c0_2] : memref<10x1xf32, #tpu.memory_space<vmem>>, vector<10x1xf32>
    %2 = vector.broadcast %1 : vector<10x1xf32> to vector<10x512xf32>
    %3 = arith.mulf %0, %2 : vector<10x512xf32>
    %cst = arith.constant dense<0.000000e+00> : vector<512xf32>
    %4 = vector.multi_reduction <add>, %3, %cst [0] : vector<10x512xf32> to vector<512xf32>
    %5 = vector.shape_cast %4 : vector<512xf32> to vector<1x512xf32>
    %c0_3 = arith.constant 0 : index
    %6 = memref.load %arg3[%c0_3] : memref<1xf32, #tpu.memory_space<smem>>
    %7 = vector.broadcast %6 : f32 to vector<1x512xf32>
    %8 = arith.addf %5, %7 : vector<1x512xf32>
    %c0_4 = arith.constant 0 : index
    %c0_5 = arith.constant 0 : index
    %9 = vector.load %arg4[%c0_4, %c0_5] : memref<1x512xf32, #tpu.memory_space<vmem>>, vector<1x512xf32>
    tpu.vector_store %arg4[%c0_4, %c0_5], %8 {strides = array<i32>} : memref<1x512xf32, #tpu.memory_space<vmem>>, vector<1x512xf32>,
    return
  }
  func.func @transform_0(%arg0: i32) -> (i32, i32) {
    %c0_i32 = arith.constant 0 : i32
    %c0_i32_0 = arith.constant 0 : i32
    return %c0_i32, %arg0 : i32, i32
  }
  func.func @transform_1(%arg0: i32) -> (i32, i32) {
    %c0_i32 = arith.constant 0 : i32
    %c0_i32_0 = arith.constant 0 : i32
    %c0_i32_1 = arith.constant 0 : i32
    return %c0_i32, %c0_i32_0 : i32, i32
  }
  func.func @transform_2(%arg0: i32) -> i32 {
    %c0_i32 = arith.constant 0 : i32
    %c0_i32_0 = arith.constant 0 : i32
    return %c0_i32 : i32
  }
  func.func @transform_3(%arg0: i32) -> (i32, i32) {
    %c0_i32 = arith.constant 0 : i32
    %c0_i32_0 = arith.constant 0 : i32
    return %c0_i32, %arg0 : i32, i32
  }
}

</mosaic_0001>

<llo_original>
// kernel: tpu_custom_call.1
$region0: #{tpu_custom_call.1}
  #allocation0 [shape = 'u32[]', space=smem, size = 0x4, offset = 0x4, fixed_abs, tag = 'smem constant byte address 0x4 - core index']
  #allocation1 [shape = 'u32[144,128]{1,0:T(1,128)}', space=vmem, size = 0x12000, scoped, tag = 'internal scratch']
  #allocation2 [shape = 'f32[1]{0:T(128)S(6)}', space=smem, size = 0x200, scoped, tag = 'scoped memory for tpu_custom_call.1']
  %s0 = inlined_call_operand.hbm [shape: f32[10,512], index: 0, kind: input, shape index: {}]
  %s1 = inlined_call_operand.vmem [shape: f32[10,1], index: 1, kind: input, shape index: {}]
  %s2 = inlined_call_operand.<no memory space> [shape: f32[1], index: 2, kind: input, shape index: {}]
  %s3 = inlined_call_operand.hbm [shape: f32[1,512], index: 3, kind: output, shape index: {}]
  %s4 = sld [smem:[#allocation0]]
  $region26: #{tpu_custom_call.1} parent=0
    _
  %s6 = ssub.s32 1, %s4
  %s7 = scalar_select 0, %s6, %s4
  %8 = sst [smem:[#allocation2]] %s2
  $region1: #{tpu_custom_call.1} parent=0
    #allocation3 [shape = 'u8[32768]{0}', space=vmem, size = 0x8000, scoped, tag = 'input window, operand 0, single buffered']
    #allocation4 [shape = 's32[1]{0}', space=sflag, size = 0x4, scoped, tag = 'scoped memory for tpu_custom_call.1']
    #allocation5 [shape = 's32[1]{0}', space=sflag, size = 0x4, scoped, tag = 'scoped memory for tpu_custom_call.1']
    #allocation6 [shape = 'u8[2048]{0}', space=vmem, size = 0x800, scoped, tag = 'output window, operand 0, single buffered']
    %9 = vsyncpa [#allocation4], 0
    %10 = vsyncpa [#allocation5], 0
    // Predicated region
    $region2: #{tpu_custom_call.1} parent=1 // pred_check
      _
    $region3: #{tpu_custom_call.1} parent=1 // pred_check_branch
      %12 = sbr.rel (0) target = $region5
    $region4: #{tpu_custom_call.1} parent=1 // pred_region
      %s14 = ssub.s32 1024, 1024
      %15 = vsyncadd [#allocation4], %s14
      %s16 = sshll.u32 [#allocation3], 4
      %s17 = int_to_ptr.vmem [resolvable:$true] %s16
      %22 = dma.hbm_to_vmem [thread:$0]  %s0, 1024, %s17, [#allocation4], 512, 512, 32
    $region5: #{tpu_custom_call.1} parent=1 // pred_fallthru
      _
    // Predicated region
    $region6: #{tpu_custom_call.1} parent=1 // pred_check
      _
    $region7: #{tpu_custom_call.1} parent=1 // pred_check_branch
      %24 = sbr.rel (0) target = $region9
    $region8: #{tpu_custom_call.1} parent=1 // pred_region
      _
    $region9: #{tpu_custom_call.1} parent=1 // pred_fallthru
      _
    // Predicated region
    $region10: #{tpu_custom_call.1} parent=1 // pred_check
      _
    $region11: #{tpu_custom_call.1} parent=1 // pred_check_branch
      %26 = sbr.rel (0) target = $region13
    $region12: #{tpu_custom_call.1} parent=1 // pred_region
      _
    $region13: #{tpu_custom_call.1} parent=1 // pred_fallthru
      _
    // Predicated region
    $region14: #{tpu_custom_call.1} parent=1 // pred_check
      _
    $region15: #{tpu_custom_call.1} parent=1 // pred_check_branch
      %28 = sbr.rel (0) target = $region17
    $region16: #{tpu_custom_call.1} parent=1 // pred_region
      %29 = dma.done [#allocation4], 1024
    $region17: #{tpu_custom_call.1} parent=1 // pred_fallthru
      _
    %v30 = vld [vmem:[#allocation3] sm:$0xff]
    %v31 = vld [vmem:[#allocation3 + $0x8] sm:$0xff]
    %v32 = vld [vmem:[#allocation3 + $0x10] sm:$0xff]
    %v33 = vld [vmem:[#allocation3 + $0x18] sm:$0xff]
    %v34 = vld [vmem:[#allocation3 + $0x20] sm:$0x3]
    %v35 = vld [vmem:[#allocation3 + $0x28] sm:$0x3]
    %v36 = vld [vmem:[#allocation3 + $0x30] sm:$0x3]
    %v37 = vld [vmem:[#allocation3 + $0x38] sm:$0x3]
    %v38 = vld [vmem:[%s1] sm:$0xff]
    %v39 = vld [vmem:[%s1 + $0x8] sm:$0x3]
    %41 = vset.pattern.permute.xlu0 0
    %42 = vperm.xlu0 %41, %v38
    %v43 = vpop.permute.xlu0 %42
    %46 = vset.pattern.permute.xlu0 0
    %47 = vperm.xlu0 %46, %v39
    %v48 = vpop.permute.xlu0 %47
    %v50 = vmul.f32 %v30, %v43
    %v51 = vmul.f32 %v31, %v43
    %v52 = vmul.f32 %v32, %v43
    %v53 = vmul.f32 %v33, %v43
    %v54 = vmul.f32 %v34, %v48
    %v55 = vmul.f32 %v35, %v48
    %v56 = vmul.f32 %v36, %v48
    %v57 = vmul.f32 %v37, %v48
    %vm58 = vcmask 1041408
    %v59 = vsel %vm58, %v54, 0.0
    %v60 = vadd.f32 %v50, %v59
    %v61 = vrot.slane %v60, 4
    %v62 = vadd.f32 %v60, %v61
    %v63 = vrot.slane %v62, 2
    %v64 = vadd.f32 %v62, %v63
    %v65 = vrot.slane %v64, 1
    %v66 = vadd.f32 %v64, %v65
    %v67 = vsel %vm58, %v55, 0.0
    %v68 = vadd.f32 %v51, %v67
    %v69 = vrot.slane %v68, 4
    %v70 = vadd.f32 %v68, %v69
    %v71 = vrot.slane %v70, 2
    %v72 = vadd.f32 %v70, %v71
    %v73 = vrot.slane %v72, 1
    %v74 = vadd.f32 %v72, %v73
    %v75 = vsel %vm58, %v56, 0.0
    %v76 = vadd.f32 %v52, %v75
    %v77 = vrot.slane %v76, 4
    %v78 = vadd.f32 %v76, %v77
    %v79 = vrot.slane %v78, 2
    %v80 = vadd.f32 %v78, %v79
    %v81 = vrot.slane %v80, 1
    %v82 = vadd.f32 %v80, %v81
    %v83 = vsel %vm58, %v57, 0.0
    %v84 = vadd.f32 %v53, %v83
    %v85 = vrot.slane %v84, 4
    %v86 = vadd.f32 %v84, %v85
    %v87 = vrot.slane %v86, 2
    %v88 = vadd.f32 %v86, %v87
    %v89 = vrot.slane %v88, 1
    %v90 = vadd.f32 %v88, %v89
    %s91 = sld [smem:[#allocation2]]
    %v92 = vstv %s91
    %v93 = vadd.f32 %v66, %v92
    %v94 = vadd.f32 %v74, %v92
    %v95 = vadd.f32 %v82, %v92
    %v96 = vadd.f32 %v90, %v92
    %v101 = vcombine.low %v93, %v94
    %v102 = vcombine.low %v95, %v96
    %v104 = vunpack.c.l.s4 1966171168
    %v105 = vunpack.c.0.s8 %v104
    %v106 = vlaneseq
    %v107 = vshrl.u32 %v106, 7
    %v108 = vsub.s32 %v105, %v107
    %v109 = vrot.slane %v101, %v108
    %v111 = vunpack.c.l.s4 1966171168
    %v112 = vunpack.c.0.s8 %v111
    %v113 = vlaneseq
    %v114 = vshrl.u32 %v113, 7
    %v115 = vsub.s32 %v112, %v114
    %v116 = vrot.slane %v102, %v115
    %v117 = vcombine.low %v109, %v116
    %v119 = vunpack.c.l.s4 1966171168
    %v120 = vunpack.c.0.s8 %v119
    %v121 = vlaneseq
    %v122 = vshrl.u32 %v121, 7
    %v123 = vsub.s32 %v120, %v122
    %v124 = vrot.slane %v117, %v123
    %v126 = vlaneseq
    %vm127 = vcmp.ge.s32.totalorder %v126, 0
    %vm128 = vcmp.lt.s32.totalorder %v126, 512
    %vm129 = vmand %vm127, %vm128
    %130 = vst.msk [vmem:[#allocation6] sm:$0xf] %vm129, %v124
    // Predicated region
    $region18: #{tpu_custom_call.1} parent=1 // pred_check
      _
    $region19: #{tpu_custom_call.1} parent=1 // pred_check_branch
      %132 = sbr.rel (0) target = $region21
    $region20: #{tpu_custom_call.1} parent=1 // pred_region
      %s134 = ssub.s32 64, 64
      %135 = vsyncadd [#allocation5], %s134
      %s137 = sshll.u32 [#allocation6], 4
      %s138 = int_to_ptr.vmem [resolvable:$true] %s137
      %140 = dma.vmem_to_hbm [thread:$0]  %s138, 64, %s3, [#allocation5]
    $region21: #{tpu_custom_call.1} parent=1 // pred_fallthru
      _
    // Predicated region
    $region22: #{tpu_custom_call.1} parent=1 // pred_check
      _
    $region23: #{tpu_custom_call.1} parent=1 // pred_check_branch
      %142 = sbr.rel (0) target = $region25
    $region24: #{tpu_custom_call.1} parent=1 // pred_region
      %143 = dma.done [#allocation5], 64
    $region25: #{tpu_custom_call.1} parent=1 // pred_fallthru
      _
    %144 = vsyncpa [#allocation4], 1
    %145 = vsyncpa [#allocation5], 1

</llo_original>
